<compile_context>
chip_gen: v7x
topology: tpu7x:2x2x1
jax: 0.10.0
libtpu: 0.0.40
codegen_flags: <defaults>
</compile_context>

<pallas_src>
import math

import jax
import jax.numpy as jnp
from jax import lax
from jax.experimental import pallas as pl
from jax.experimental.pallas import tpu as pltpu


def _make_mape_kernel(R, C, br, bc, spc, need_row_mask, need_col_mask, acc_rows):
    groups = br // acc_rows  # br is a multiple of acc_rows by construction

    def kernel(f_ref, t_ref, m_ref, out_ref, acc_ref):
        c = pl.program_id(0)   # core (parallel axis)
        i = pl.program_id(1)   # row-block step within this core
        j = pl.program_id(2)   # col-block step

        @pl.when((i == 0) & (j == 0))
        def _init():
            acc_ref[...] = jnp.zeros_like(acc_ref)

        # Native-dtype tile loads, f32 cast in-register (hidden under the DMA).
        f = f_ref[...].astype(jnp.float32)
        tgt = t_ref[...].astype(jnp.float32)
        m = m_ref[...].astype(jnp.float32)

        # divide_no_nan: (w < inf) is False for NaN and +inf, True for finite and
        # -inf, so one compare+select reproduces the PyTorch cleanup exactly.
        w = m / tgt
        w = jnp.where(w < jnp.inf, w, jnp.float32(0.0))
        contrib = jnp.abs((f - tgt) * w)
        # (w == -inf and forecast == target) -> 0 * -inf = NaN, as in PyTorch.

        if need_row_mask:
            # Mask rows past the true extent (edge block and any clamped/duplicated
            # block from the 2-core split).  Select, not multiply, so garbage
            # inf/NaN in the out-of-bounds region cannot leak into the sum.
            row_start = (c * spc + i) * br
            rows = lax.broadcasted_iota(jnp.int32, (br, 1), 0) + row_start
            contrib = jnp.where(rows < R, contrib, jnp.float32(0.0))
        if need_col_mask:
            col_start = j * bc
            cols = lax.broadcasted_iota(jnp.int32, (1, bc), 1) + col_start
            contrib = jnp.where(cols < C, contrib, jnp.float32(0.0))

        if groups > 1:
            # Fold the tile into a few-vreg accumulator with VPU adds; the XLU
            # cross-lane reduce is deferred to the finalize block.
            contrib = contrib.reshape(groups, acc_rows, bc).sum(axis=0)
        acc_ref[...] += contrib

        @pl.when((i == pl.num_programs(1) - 1) & (j == pl.num_programs(2) - 1))
        def _finalize():
            out_ref[0, 0] = jnp.sum(acc_ref[...])

    return kernel


def _vmem_capacity_bytes():
    try:
        cap = getattr(pltpu.get_tpu_info(), "vmem_capacity_bytes", None)
        if cap:
            return int(cap)
    except Exception:
        pass
    return 64 * 1024 * 1024  # conservative fallback: v7x per-TensorCore VMEM


def mape_loss(insample, freq, forecast, target, mask, _target_tile_bytes=None):
    """Pallas implementation of mape_loss.forward. Returns a scalar float32."""
    del insample, freq  # unused, as in the PyTorch module
    assert forecast.shape == target.shape == mask.shape
    shape = forecast.shape
    n = math.prod(shape) if shape else 1
    if n == 0:
        return jnp.float32(jnp.nan)  # torch.mean of an empty tensor is NaN

    # 2-D view: merge leading dims (free for the default row-major layout).
    if len(shape) == 0:
        R, C = 1, 1
    elif len(shape) == 1:
        R, C = (n // 128, 128) if (n >= 128 and n % 128 == 0) else (1, n)
    else:
        C = int(shape[-1])
        R = n // C
    f2 = forecast.reshape(R, C)
    t2 = target.reshape(R, C)
    m2 = mask.reshape(R, C)

    # Per-chip tile / VMEM budget (3 inputs x 2 pipeline buffers + small accumulator).
    if _target_tile_bytes is None:
        if _vmem_capacity_bytes() >= 128 * 1024 * 1024:   # v5e / v6e: plenty of VMEM
            target_tile_bytes = 8 * 1024 * 1024
            vmem_limit = 80 * 1024 * 1024
        else:                                             # v7x: 64 MiB per TC
            target_tile_bytes = 4 * 1024 * 1024
            vmem_limit = 40 * 1024 * 1024
    else:                                                 # test override (small shapes)
        target_tile_bytes = int(_target_tile_bytes)
        vmem_limit = 40 * 1024 * 1024

    itemsizes = [a.dtype.itemsize for a in (f2, t2, m2)]
    max_item = max(itemsizes)
    # Sub-32-bit dtypes pack along sublanes: a tiled row-block must be a multiple
    # of 16 (bf16) / 32 (int8); a full-extent row-block is always legal.
    sub = max({4: 8, 2: 16, 1: 32}.get(it, 8) for it in itemsizes)

    # Column block: full extent if modest, else lane-dense 1024-wide tiles.
    bc = C if C <= 2048 else 1024
    tile_elems = max(1, target_tile_bytes // max_item)
    max_br = max(1, tile_elems // bc)
    if max_br >= R:
        br = R
    else:
        br = max(sub, (max_br // sub) * sub)

    row_blocks = pl.cdiv(R, br)
    col_blocks = pl.cdiv(C, bc)

    # Two-core split of the row-block range: real parallelism on v7x megacore,
    # a plain serial split on single-TC v5e/v6e.
    num_cores = 2 if row_blocks >= 2 else 1
    spc = pl.cdiv(row_blocks, num_cores)          # row-block steps per core

    need_row_mask = (R % br != 0) or (num_cores * spc != row_blocks)
    need_col_mask = (C % bc != 0)
    acc_rows = 8 if (br >= 8 and br % 8 == 0) else br

    if num_cores * spc > row_blocks:
        # Odd split: clamp the block index so no DMA starts past the array; the
        # duplicated block is zeroed by the in-kernel row mask.
        def in_map(c, i, j):
            return (jnp.minimum(c * spc + i, row_blocks - 1), j)
    else:
        def in_map(c, i, j):
            return (c * spc + i, j)

    kernel = _make_mape_kernel(R, C, br, bc, spc, need_row_mask, need_col_mask,
                               acc_rows)

    in_spec = pl.BlockSpec((br, bc), in_map)
    partials = pl.pallas_call(
        kernel,
        out_shape=jax.ShapeDtypeStruct((num_cores, 1), jnp.float32),
        grid_spec=pltpu.PrefetchScalarGridSpec(
            num_scalar_prefetch=0,
            grid=(num_cores, spc, col_blocks),
            in_specs=[in_spec, in_spec, in_spec],
            out_specs=pl.BlockSpec(
                (1, 1), lambda c, i, j: (c, 0),
                memory_space=pltpu.MemorySpace.SMEM),
            scratch_shapes=[pltpu.VMEM((acc_rows, bc), jnp.float32)],
        ),
        compiler_params=pltpu.CompilerParams(
            dimension_semantics=("parallel", "arbitrary", "arbitrary"),
            vmem_limit_bytes=vmem_limit,
        ),
        cost_estimate=pl.CostEstimate(
            flops=7 * n,
            transcendentals=0,
            bytes_accessed=n * sum(itemsizes) + 4 * num_cores,
        ),
    )(f2, t2, m2)

    # Mean over the true element count; 1/n is computed in Python double precision
    # and rounded once, avoiding f32(n) rounding bias for n > 2^24.
    return jnp.sum(partials) * jnp.float32(1.0 / n)


def _reference(forecast, target, mask):
    """Pure-JAX mirror of the PyTorch divide_no_nan + mean(|.|) reference."""
    f = forecast.astype(jnp.float32)
    t = target.astype(jnp.float32)
    m = mask.astype(jnp.float32)
    w = m / t
    w = jnp.where(jnp.isnan(w), 0.0, w)
    w = jnp.where(w == jnp.inf, 0.0, w)
    return jnp.mean(jnp.abs((f - t) * w))


if __name__ == "__main__":
    key = jax.random.PRNGKey(0)
    k1, k2, k3, k4, k5, k6 = jax.random.split(key, 6)

    # --- test 1: spec-shaped (batch, time) f32, exercising the divide_no_nan paths ---
    batch, time = 4, 128
    forecast = jax.random.normal(k1, (batch, time), dtype=jnp.float32)
    target = jax.random.normal(k2, (batch, time), dtype=jnp.float32)
    mask = (jax.random.uniform(k3, (batch, time)) > 0.2).astype(jnp.float32)
    target = target.at[0, 0:4].set(0.0)
    mask = mask.at[0, 0:4].set(1.0)      # mask/target = +inf      -> weight 0
    target = target.at[1, 0:4].set(0.0)
    mask = mask.at[1, 0:4].set(0.0)      # mask/target = 0/0 = NaN -> weight 0
    insample = jax.random.normal(k4, (batch, 32), dtype=jnp.float32)  # unused by forward
    freq = 1

    loss = mape_loss(insample, freq, forecast, target, mask)
    jax.block_until_ready(loss)
    ref = _reference(forecast, target, mask)
    assert jnp.allclose(loss, ref, rtol=1e-5, atol=1e-6), (loss, ref)

    # --- test 2: bf16 inputs, small tile override to exercise the multi-block grid,
    #     the 2-core row split (with clamped duplicate block), the in-kernel row mask,
    #     and the (8, cols) accumulator fold -------------------------------------------
    b2, t2len = 70, 192
    f_bf = jax.random.normal(k5, (b2, t2len), dtype=jnp.float32).astype(jnp.bfloat16)
    t_bf = jax.random.normal(k6, (b2, t2len), dtype=jnp.float32).astype(jnp.bfloat16)
    m_bf = (jax.random.uniform(k3, (b2, t2len)) > 0.5).astype(jnp.bfloat16)

    loss2 = mape_loss(insample, freq, f_bf, t_bf, m_bf,
                      _target_tile_bytes=16 * t2len * 2)   # -> 16-row bf16 blocks
    jax.block_until_ready(loss2)
    ref2 = _reference(f_bf, t_bf, m_bf)
    assert jnp.allclose(loss2, ref2, rtol=1e-4, atol=1e-6), (loss2, ref2)

    print("KERNEL_OK")
</pallas_src>

<mosaic_0001>
module attributes {stable_mosaic.version = 11 : i64} {
  func.func @kernel(%arg0: i32, %arg1: i32, %arg2: i32, %arg3: memref<4x128xf32, #tpu.memory_space<vmem>>, %arg4: memref<4x128xf32, #tpu.memory_space<vmem>>, %arg5: memref<4x128xf32, #tpu.memory_space<vmem>>, %arg6: memref<1x1xf32, #tpu.memory_space<smem>>, %arg7: memref<4x128xf32, #tpu.memory_space<vmem>>) attributes {dimension_semantics = [#tpu.dimension_semantics<parallel>, #tpu.dimension_semantics<arbitrary>, #tpu.dimension_semantics<arbitrary>], iteration_bounds = array<i64: 1, 1, 1>, scalar_prefetch = 0 : i64, scratch_operands = 1 : i64, tpu.core_type = #tpu.core_type<tc>, window_params = [{transform_indices = @transform_0, window_bounds = array<i64: 4, 128>}, {transform_indices = @transform_1, window_bounds = array<i64: 4, 128>}, {transform_indices = @transform_2, window_bounds = array<i64: 4, 128>}, {transform_indices = @transform_3, window_bounds = array<i64: 1, 1>}]} {
    %c0_i32 = arith.constant 0 : i32
    %0 = arith.cmpi eq, %arg1, %c0_i32 : i32
    %c0_i32_0 = arith.constant 0 : i32
    %1 = arith.cmpi eq, %arg2, %c0_i32_0 : i32
    %2 = arith.andi %0, %1 : i1
    %3 = arith.extui %2 : i1 to i32
    %c0_i32_1 = arith.constant 0 : i32
    %4 = arith.cmpi ne, %3, %c0_i32_1 : i32
    scf.if %4 {
      %cst_15 = arith.constant 0.000000e+00 : f32
      %24 = vector.broadcast %cst_15 : f32 to vector<4x128xf32>
      %c0_16 = arith.constant 0 : index
      %c0_17 = arith.constant 0 : index
      %25 = vector.load %arg7[%c0_16, %c0_17] : memref<4x128xf32, #tpu.memory_space<vmem>>, vector<4x128xf32>
      tpu.vector_store %arg7[%c0_16, %c0_17], %24 {strides = array<i32>} : memref<4x128xf32, #tpu.memory_space<vmem>>, vector<4x128xf32>,
    } else {
    }
    %c0 = arith.constant 0 : index
    %c0_2 = arith.constant 0 : index
    %5 = vector.load %arg3[%c0, %c0_2] : memref<4x128xf32, #tpu.memory_space<vmem>>, vector<4x128xf32>
    %c0_3 = arith.constant 0 : index
    %c0_4 = arith.constant 0 : index
    %6 = vector.load %arg4[%c0_3, %c0_4] : memref<4x128xf32, #tpu.memory_space<vmem>>, vector<4x128xf32>
    %c0_5 = arith.constant 0 : index
    %c0_6 = arith.constant 0 : index
    %7 = vector.load %arg5[%c0_5, %c0_6] : memref<4x128xf32, #tpu.memory_space<vmem>>, vector<4x128xf32>
    %8 = arith.divf %7, %6 : vector<4x128xf32>
    %cst = arith.constant 0x7F800000 : f32
    %9 = vector.broadcast %cst : f32 to vector<4x128xf32>
    %10 = arith.cmpf olt, %8, %9 : vector<4x128xf32>
    %cst_7 = arith.constant 0.000000e+00 : f32
    %11 = vector.broadcast %cst_7 : f32 to vector<4x128xf32>
    %12 = arith.select %10, %8, %11 : vector<4x128xi1>, vector<4x128xf32>
    %13 = arith.subf %5, %6 : vector<4x128xf32>
    %14 = arith.mulf %13, %12 : vector<4x128xf32>
    %15 = math.absf %14 : vector<4x128xf32>
    %c0_8 = arith.constant 0 : index
    %c0_9 = arith.constant 0 : index
    %16 = vector.load %arg7[%c0_8, %c0_9] : memref<4x128xf32, #tpu.memory_space<vmem>>, vector<4x128xf32>
    %17 = arith.addf %16, %15 : vector<4x128xf32>
    %c0_10 = arith.constant 0 : index
    %c0_11 = arith.constant 0 : index
    %18 = vector.load %arg7[%c0_10, %c0_11] : memref<4x128xf32, #tpu.memory_space<vmem>>, vector<4x128xf32>
    tpu.vector_store %arg7[%c0_10, %c0_11], %17 {strides = array<i32>} : memref<4x128xf32, #tpu.memory_space<vmem>>, vector<4x128xf32>,
    %c0_i32_12 = arith.constant 0 : i32
    %19 = arith.cmpi eq, %arg1, %c0_i32_12 : i32
    %c0_i32_13 = arith.constant 0 : i32
    %20 = arith.cmpi eq, %arg2, %c0_i32_13 : i32
    %21 = arith.andi %19, %20 : i1
    %22 = arith.extui %21 : i1 to i32
    %c0_i32_14 = arith.constant 0 : i32
    %23 = arith.cmpi ne, %22, %c0_i32_14 : i32
    scf.if %23 {
      %c0_15 = arith.constant 0 : index
      %c0_16 = arith.constant 0 : index
      %24 = vector.load %arg7[%c0_15, %c0_16] : memref<4x128xf32, #tpu.memory_space<vmem>>, vector<4x128xf32>
      %25 = vector.shape_cast %24 : vector<4x128xf32> to vector<1x4x128xf32>
      %cst_17 = arith.constant dense<0.000000e+00> : vector<1xf32>
      %26 = vector.multi_reduction <add>, %25, %cst_17 [1, 2] : vector<1x4x128xf32> to vector<1xf32>
      %27 = vector.shape_cast %26 : vector<1xf32> to vector<1x1x1xf32>
      %28 = vector.extract %27[0, 0, 0] : f32 from vector<1x1x1xf32>
      %c0_18 = arith.constant 0 : index
      %c0_19 = arith.constant 0 : index
      %29 = memref.load %arg6[%c0_18, %c0_19] : memref<1x1xf32, #tpu.memory_space<smem>>
      memref.store %28, %arg6[%c0_18, %c0_19] : memref<1x1xf32, #tpu.memory_space<smem>>
    } else {
    }
    return
  }
  func.func @transform_0(%arg0: i32, %arg1: i32, %arg2: i32) -> (i32, i32) {
    %c1_i32 = arith.constant 1 : i32
    %0 = arith.muli %arg0, %c1_i32 : i32
    %1 = arith.addi %0, %arg1 : i32
    %c0_i32 = arith.constant 0 : i32
    return %1, %arg2 : i32, i32
  }
  func.func @transform_1(%arg0: i32, %arg1: i32, %arg2: i32) -> (i32, i32) {
    %c1_i32 = arith.constant 1 : i32
    %0 = arith.muli %arg0, %c1_i32 : i32
    %1 = arith.addi %0, %arg1 : i32
    %c0_i32 = arith.constant 0 : i32
    return %1, %arg2 : i32, i32
  }
  func.func @transform_2(%arg0: i32, %arg1: i32, %arg2: i32) -> (i32, i32) {
    %c1_i32 = arith.constant 1 : i32
    %0 = arith.muli %arg0, %c1_i32 : i32
    %1 = arith.addi %0, %arg1 : i32
    %c0_i32 = arith.constant 0 : i32
    return %1, %arg2 : i32, i32
  }
  func.func @transform_3(%arg0: i32, %arg1: i32, %arg2: i32) -> (i32, i32) {
    %c0_i32 = arith.constant 0 : i32
    %c0_i32_0 = arith.constant 0 : i32
    return %arg0, %c0_i32 : i32, i32
  }
}

</mosaic_0001>

<llo_original>
// kernel: tpu_custom_call.1
$region0: #{tpu_custom_call.1}
  #allocation0 [shape = 'u32[]', space=smem, size = 0x4, offset = 0x4, fixed_abs, tag = 'smem constant byte address 0x4 - core index']
  #allocation1 [shape = 'u32[144,128]{1,0:T(1,128)}', space=vmem, size = 0x12000, scoped, tag = 'internal scratch']
  #allocation2 [shape = 'f32[4,128]{1,0:T(4,128)}', space=vmem, size = 0x800, scoped, tag = 'scratch operand']
  %s0 = inlined_call_operand.hbm [shape: f32[4,128], index: 0, kind: input, shape index: {}]
  %s1 = inlined_call_operand.hbm [shape: f32[4,128], index: 1, kind: input, shape index: {}]
  %s2 = inlined_call_operand.vmem [shape: f32[4,128], index: 2, kind: input, shape index: {}]
  %s3 = inlined_call_operand.hbm [shape: f32[1,1], index: 3, kind: output, shape index: {}]
  %s4 = sld [smem:[#allocation0]]
  $region38: #{tpu_custom_call.1} parent=0
    _
  %s6 = ssub.s32 1, %s4
  %s7 = scalar_select 0, %s6, %s4
  $region1: #{tpu_custom_call.1} parent=0
    #allocation3 [shape = 'u8[2048]{0}', space=vmem, size = 0x800, scoped, tag = 'input window, operand 0, single buffered']
    #allocation4 [shape = 's32[1]{0}', space=sflag, size = 0x4, scoped, tag = 'scoped memory for tpu_custom_call.1']
    #allocation5 [shape = 's32[1]{0}', space=sflag, size = 0x4, scoped, tag = 'scoped memory for tpu_custom_call.1']
    #allocation6 [shape = 'u8[2048]{0}', space=vmem, size = 0x800, scoped, tag = 'input window, operand 1, single buffered']
    #allocation7 [shape = 's32[1]{0}', space=sflag, size = 0x4, scoped, tag = 'scoped memory for tpu_custom_call.1']
    #allocation8 [shape = 'u8[512]{0}', space=smem, size = 0x200, scoped, tag = 'output window, operand 0, single buffered']
    %8 = vsyncpa [#allocation4], 0
    %9 = vsyncpa [#allocation7], 0
    %10 = vsyncpa [#allocation5], 0
    // Predicated region
    $region2: #{tpu_custom_call.1} parent=1 // pred_check
      _
    $region3: #{tpu_custom_call.1} parent=1 // pred_check_branch
      %12 = sbr.rel (0) target = $region5
    $region4: #{tpu_custom_call.1} parent=1 // pred_region
      %s13 = sadd.s32 0, 0
      %s15 = ssub.s32 64, 64
      %16 = vsyncadd [#allocation4], %s15
      %s17 = smul.addr %s13, 64
      %s18 = scalar_lea.hbm %s0, %s17
      %s20 = sshll.u32 [#allocation3], 4
      %s21 = int_to_ptr.vmem [resolvable:$true] %s20
      %23 = dma.hbm_to_vmem [thread:$0]  %s18, 64, %s21, [#allocation4]
    $region5: #{tpu_custom_call.1} parent=1 // pred_fallthru
      _
    // Predicated region
    $region6: #{tpu_custom_call.1} parent=1 // pred_check
      _
    $region7: #{tpu_custom_call.1} parent=1 // pred_check_branch
      %25 = sbr.rel (0) target = $region9
    $region8: #{tpu_custom_call.1} parent=1 // pred_region
      %s26 = sadd.s32 0, 0
      %s28 = ssub.s32 64, 64
      %29 = vsyncadd [#allocation7], %s28
      %s30 = smul.addr %s26, 64
      %s31 = scalar_lea.hbm %s1, %s30
      %s33 = sshll.u32 [#allocation6], 4
      %s34 = int_to_ptr.vmem [resolvable:$true] %s33
      %36 = dma.hbm_to_vmem [thread:$0]  %s31, 64, %s34, [#allocation7]
    $region9: #{tpu_custom_call.1} parent=1 // pred_fallthru
      _
    // Predicated region
    $region10: #{tpu_custom_call.1} parent=1 // pred_check
      _
    $region11: #{tpu_custom_call.1} parent=1 // pred_check_branch
      %38 = sbr.rel (0) target = $region13
    $region12: #{tpu_custom_call.1} parent=1 // pred_region
      %s39 = sadd.s32 0, 0
      %p40 = scmp.lt.s32.totalorder %s39, 0
      %s41 = scalar_select %p40, %s39, 0
      %s42 = smul.addr %s41, 4
      %s43 = scalar_lea.vmem %s2, %s42
      %s44 = sadd.s32 0, 0
    $region13: #{tpu_custom_call.1} parent=1 // pred_fallthru
      _
    // Predicated region
    $region14: #{tpu_custom_call.1} parent=1 // pred_check
      _
    $region15: #{tpu_custom_call.1} parent=1 // pred_check_branch
      %46 = sbr.rel (0) target = $region17
    $region16: #{tpu_custom_call.1} parent=1 // pred_region
      %47 = dma.done [#allocation4], 64
    $region17: #{tpu_custom_call.1} parent=1 // pred_fallthru
      _
    // Predicated region
    $region18: #{tpu_custom_call.1} parent=1 // pred_check
      _
    $region19: #{tpu_custom_call.1} parent=1 // pred_check_branch
      %49 = sbr.rel (0) target = $region21
    $region20: #{tpu_custom_call.1} parent=1 // pred_region
      %50 = dma.done [#allocation7], 64
    $region21: #{tpu_custom_call.1} parent=1 // pred_fallthru
      _
    %s51 = sadd.s32 0, 0
    %p52 = scmp.lt.s32.totalorder %s51, 0
    %s53 = scalar_select %p52, %s51, 0
    %s54 = smul.addr %s53, 4
    %s55 = scalar_lea.vmem %s2, %s54
    %s56 = sadd.s32 0, 0
    %s57 = sadd.s32 0, 0
    %s58 = sadd.s32 0, 0
    %p59 = scmp.lt.s32.totalorder %s58, 0
    %s60 = scalar_select %p59, %s58, 0
    %s61 = smul.addr %s60, 4
    %s62 = scalar_lea.vmem %s2, %s61
    %s63 = sadd.s32 0, 0
    %p64 = scmp.eq.s32.totalorder 0, 0
    %p65 = scmp.eq.s32.totalorder 0, 0
    %p66 = pnand %p64, %p65
    %p67 = pneg %p66
    // Predicated region
    $region22: #{tpu_custom_call.1} parent=1 // pred_check
      _
    $region23: #{tpu_custom_call.1} parent=1 // pred_check_branch
      %69 = sbr.rel (%p66) target = $region25
    $region24: #{tpu_custom_call.1} parent=1 // pred_region
      %70 = vst [vmem:[#allocation2] sm:$0xf] 0.0
    $region25: #{tpu_custom_call.1} parent=1 // pred_fallthru
      _
    %v71 = vld [vmem:[#allocation3] sm:$0xf]
    %v72 = vld [vmem:[#allocation6] sm:$0xf]
    %v73 = vld [vmem:[%s62] sm:$0xf]
    %v74 = vrcp.pop %v72
    %v75 = vmul.f32 %v73, %v74
    %vm76 = vcmp.lt.f32.partialorder %v75, inf
    %v77 = vsel %vm76, %v75, 0.0
    %v78 = vsub.f32 %v71, %v72
    %v79 = vmul.f32 %v78, %v77
    %v80 = vand.u32 2147483647, %v79
    %v81 = vld [vmem:[#allocation2] sm:$0xf]
    %v82 = vadd.f32 %v81, %v80
    %83 = vst [vmem:[#allocation2] sm:$0xf] %v82
    // Predicated region
    $region26: #{tpu_custom_call.1} parent=1 // pred_check
      _
    $region27: #{tpu_custom_call.1} parent=1 // pred_check_branch
      %85 = sbr.rel (%p66) target = $region29
    $region28: #{tpu_custom_call.1} parent=1 // pred_region
      %v86 = vld [vmem:[#allocation2] sm:$0xf]
      %vm87 = vcmask 1043456
      %v88 = vsel %vm87, %v86, 0.0
      %89 = vadd.xlane.f32.xlu0 %v88
      %v90 = vpop.xlane.xlu0 %89
      %v91 = vrot.slane %v90, 4
      %v92 = vadd.f32 %v90, %v91
      %v93 = vrot.slane %v92, 2
      %v94 = vadd.f32 %v92, %v93
      %v95 = vrot.slane %v94, 1
      %v96 = vadd.f32 %v94, %v95
      %s97 = vtos %v96
      %s98 = scalar_lea.smem [#allocation8], 0
      %99 = sst [smem:[%s98]] %s97
    $region29: #{tpu_custom_call.1} parent=1 // pred_fallthru
      _
    // Predicated region
    $region30: #{tpu_custom_call.1} parent=1 // pred_check
      _
    $region31: #{tpu_custom_call.1} parent=1 // pred_check_branch
      %101 = sbr.rel (0) target = $region33
    $region32: #{tpu_custom_call.1} parent=1 // pred_region
      %s103 = ssub.s32 16, 16
      %104 = vsyncadd [#allocation5], %s103
      %107 = dma.smem_to_hbm [#allocation8], 16, %s3, [#allocation5]
    $region33: #{tpu_custom_call.1} parent=1 // pred_fallthru
      _
    // Predicated region
    $region34: #{tpu_custom_call.1} parent=1 // pred_check
      _
    $region35: #{tpu_custom_call.1} parent=1 // pred_check_branch
      %109 = sbr.rel (0) target = $region37
    $region36: #{tpu_custom_call.1} parent=1 // pred_region
      %110 = dma.done [#allocation5], 16
    $region37: #{tpu_custom_call.1} parent=1 // pred_fallthru
      _
    %111 = sfence
    %112 = vsyncpa [#allocation4], 1
    %113 = vsyncpa [#allocation7], 1
    %114 = vsyncpa [#allocation5], 1

</llo_original>
